<compile_context>
chip_gen: v7x
topology: tpu7x:2x2x1
jax: 0.10.0
libtpu: 0.0.40
codegen_flags: <defaults>
</compile_context>

<pallas_src>
import jax
import jax.numpy as jnp
from jax import lax
from jax.experimental import pallas as pl
from jax.experimental.pallas import tpu as pltpu


def _default_tanh_dtype(compute_dtype):
    """bf16 tanh only where the EUP supports it (v6e / v7x); f32 elsewhere."""
    if jnp.dtype(compute_dtype) == jnp.dtype(jnp.float32):
        return jnp.float32
    try:
        kind = jax.devices()[0].device_kind.lower()
    except Exception:
        return jnp.float32
    if ("v6" in kind) or ("v7" in kind) or ("7x" in kind):
        return jnp.bfloat16
    return jnp.float32


def _round_up(a, m):
    return -(-a // m) * m


def _vmem_cap_rows(d_in, d_h, budget_bytes, compute_dtype):
    """Max batch rows per tile so double-buffered x + intermediates + weights
    stay under `budget_bytes` of VMEM (conservative estimate)."""
    cb = jnp.dtype(compute_dtype).itemsize
    per_row = (2 * 4 * d_in            # double-buffered f32 x block
               + cb * d_in             # compute-dtype cast of x
               + (4 + 2 * cb) * (128 + d_h)   # f32 pre-acts + casted h1/h2
               + 8)                    # double-buffered output row
    weights = 2 * cb * (d_in * 128 + 128 * d_h + d_h) + 2 * 4 * (128 + d_h + 1)
    rows = max(128, int((budget_bytes - weights) // max(per_row, 1)))
    return (rows // 128) * 128


def _make_critic_kernel(valid_b, tile_b, need_mask, compute_dtype, tanh_dtype):
    def kernel(x_ref, w1_ref, b1_ref, w2_ref, b2_ref, w3_ref, b3_ref, o_ref):
        x = x_ref[...]                                            # (TILE_B, D_in) f32
        if need_mask:
            # Partial last block: zero rows past the true batch size so any
            # garbage from the clipped edge DMA can't produce NaNs (those
            # output columns are dropped on writeback anyway).
            row = (pl.program_id(0) * tile_b
                   + lax.broadcasted_iota(jnp.int32, x.shape, 0))
            x = jnp.where(row < valid_b, x, 0.0)

        h = jnp.dot(x.astype(compute_dtype), w1_ref[...],
                    preferred_element_type=jnp.float32) + b1_ref[...]
        h = jnp.tanh(h.astype(tanh_dtype))                        # (TILE_B, 128)

        h = jnp.dot(h.astype(compute_dtype), w2_ref[...],
                    preferred_element_type=jnp.float32) + b2_ref[...]
        h = jnp.tanh(h.astype(tanh_dtype))                        # (TILE_B, H)

        # fc3 (H -> 1): contract the (1, H) weight row against h's hidden dim
        # so the result lands lane-dense as (1, TILE_B) -> unmasked wide stores.
        v = lax.dot_general(w3_ref[...], h.astype(compute_dtype),
                            dimension_numbers=(((1,), (1,)), ((), ())),
                            preferred_element_type=jnp.float32)   # (1, TILE_B)
        o_ref[...] = v + b3_ref[0, 0]

    return kernel


def critic_forward(x, params, *, tile_b=4096, compute_dtype=jnp.bfloat16,
                   tanh_dtype=None, vmem_budget_bytes=32 * 1024 * 1024):
    """x: (B, input_dim) float32 -> (B, 1) float32."""
    w1, b1, w2, b2, w3, b3 = params
    B, d_in = x.shape
    d_h = w2.shape[1]

    compute_dtype = jnp.dtype(compute_dtype)
    if tanh_dtype is None:
        tanh_dtype = _default_tanh_dtype(compute_dtype)
    tanh_dtype = jnp.dtype(tanh_dtype)

    # ---- tile selection: multiple of 128, VMEM-capped, not bigger than needed,
    # and >= 2 grid steps (megacore) when the batch is large enough. ----
    tile = max(128, (int(tile_b) // 128) * 128)
    tile = min(tile, _vmem_cap_rows(d_in, d_h, vmem_budget_bytes, compute_dtype))
    tile = min(tile, _round_up(B, 128))
    if B >= 256 and -(-B // tile) < 2:
        tile = max(128, _round_up(-(-B // 2), 128))
    n_tiles = -(-B // tile)
    need_mask = (B % tile) != 0

    # One-time (tiny) wrapper-side casts: bf16 weights for the MXU, f32 biases.
    w1c = w1.astype(compute_dtype)
    w2c = w2.astype(compute_dtype)
    w3c = w3.astype(compute_dtype)
    b1f = b1.astype(jnp.float32).reshape(1, 128)
    b2f = b2.astype(jnp.float32).reshape(1, d_h)
    b3f = b3.astype(jnp.float32).reshape(1, 1)

    cost = pl.CostEstimate(
        flops=2 * B * (d_in * 128 + 128 * d_h + d_h),
        transcendentals=B * (128 + d_h),
        bytes_accessed=(4 * B * d_in + 4 * B
                        + compute_dtype.itemsize * (d_in * 128 + 128 * d_h + d_h)
                        + 4 * (128 + d_h + 1)),
    )

    kernel = _make_critic_kernel(B, tile, need_mask, compute_dtype, tanh_dtype)

    out_row = pl.pallas_call(
        kernel,
        out_shape=jax.ShapeDtypeStruct((1, B), jnp.float32),
        grid=(n_tiles,),
        in_specs=[
            pl.BlockSpec((tile, d_in), lambda i: (i, 0)),     # x: batch-tiled
            pl.BlockSpec((d_in, 128), lambda i: (0, 0)),      # w1 (VMEM-resident)
            pl.BlockSpec((1, 128), lambda i: (0, 0)),         # b1
            pl.BlockSpec((128, d_h), lambda i: (0, 0)),       # w2
            pl.BlockSpec((1, d_h), lambda i: (0, 0)),         # b2
            pl.BlockSpec((1, d_h), lambda i: (0, 0)),         # w3 row
            pl.BlockSpec(memory_space=pltpu.MemorySpace.SMEM),  # b3 scalar
        ],
        out_specs=pl.BlockSpec((1, tile), lambda i: (0, i)),  # lane-dense out row
        compiler_params=pltpu.CompilerParams(
            dimension_semantics=("parallel",),
            vmem_limit_bytes=48 * 1024 * 1024,
        ),
        cost_estimate=cost,
    )(x, w1c, b1f, w2c, b2f, w3c, b3f)

    # (1, B) row -> (B, 1) column; pure layout plumbing outside the kernel.
    return out_row.reshape(B, 1)


def init_critic_params(key, input_dim, hidden_dim):
    """Deterministic orthogonal init (gain=1.0), zero biases — mirrors
    orthogonal_init() in the PyTorch module."""
    k1, k2, k3 = jax.random.split(key, 3)
    ortho = jax.nn.initializers.orthogonal(scale=1.0)
    # PyTorch nn.Linear weight is (out, in); init there and transpose fc1/fc2
    # to (in, out) for the kernel's x @ W convention. fc3 stays as its (1, H) row.
    w1 = ortho(k1, (128, input_dim), jnp.float32).T      # (input_dim, 128)
    w2 = ortho(k2, (hidden_dim, 128), jnp.float32).T     # (128, hidden_dim)
    w3 = ortho(k3, (1, hidden_dim), jnp.float32)         # (1, hidden_dim)
    b1 = jnp.zeros((1, 128), jnp.float32)
    b2 = jnp.zeros((1, hidden_dim), jnp.float32)
    b3 = jnp.zeros((1, 1), jnp.float32)
    return (w1, b1, w2, b2, w3, b3)


def critic_reference(x, params):
    """Pure-JAX (f32) reference of the same forward pass."""
    w1, b1, w2, b2, w3, b3 = params
    h1 = jnp.tanh(x @ w1 + b1)
    h2 = jnp.tanh(h1 @ w2 + b2)
    return h2 @ w3.T + b3


if __name__ == "__main__":
    # Small shapes consistent with the MLP path of Critic.
    batch = 2
    input_dim = 16
    hidden_dim = 32

    key = jax.random.PRNGKey(0)
    kx, kp, kx2 = jax.random.split(key, 3)
    params = init_critic_params(kp, input_dim, hidden_dim)
    x = jax.random.normal(kx, (batch, input_dim), dtype=jnp.float32)
    ref = critic_reference(x, params)

    # 1) Structural correctness in pure-f32 mode (tight-ish tolerance; MXU f32
    #    matmuls use a bf16 decomposition so allow a small slack).
    out_f32 = jax.block_until_ready(
        critic_forward(x, params, compute_dtype=jnp.float32))
    assert out_f32.shape == (batch, 1), out_f32.shape
    assert jnp.allclose(out_f32, ref, atol=2e-3, rtol=2e-3), (out_f32, ref)

    # 2) Default fast path: bf16 MXU operands (and bf16 tanh on v6e/v7x).
    out = jax.block_until_ready(critic_forward(x, params))
    assert out.shape == (batch, 1), out.shape
    assert jnp.allclose(out, ref, atol=5e-2, rtol=5e-2), (out, ref)

    # 3) Multi-tile + ragged tail (exercises the masked partial last block and
    #    the lane-dense tiled output path; no full-array pad copy).
    b2_ = 1040
    x2 = jax.random.normal(kx2, (b2_, input_dim), dtype=jnp.float32)
    ref2 = critic_reference(x2, params)
    out2 = jax.block_until_ready(critic_forward(x2, params, tile_b=512))
    assert out2.shape == (b2_, 1), out2.shape
    assert jnp.allclose(out2, ref2, atol=5e-2, rtol=5e-2)

    # TODO(synk): conv=True branch (Conv2d(1,64,3) -> Tanh -> Conv2d(64,hidden,2)
    # -> Tanh -> flatten) is not exercised by the default constructor and is not
    # implemented here.
    print("KERNEL_OK")
</pallas_src>

<mosaic_0001>
module attributes {stable_mosaic.version = 11 : i64} {
  func.func @kernel(%arg0: i32, %arg1: memref<128x16xf32, #tpu.memory_space<vmem>>, %arg2: memref<16x128xf32, #tpu.memory_space<vmem>>, %arg3: memref<1x128xf32, #tpu.memory_space<vmem>>, %arg4: memref<128x32xf32, #tpu.memory_space<vmem>>, %arg5: memref<1x32xf32, #tpu.memory_space<vmem>>, %arg6: memref<1x32xf32, #tpu.memory_space<vmem>>, %arg7: memref<1x1xf32, #tpu.memory_space<smem>>, %arg8: memref<1x128xf32, #tpu.memory_space<vmem>>) attributes {dimension_semantics = [#tpu.dimension_semantics<parallel>], iteration_bounds = array<i64: 1>, scalar_prefetch = 0 : i64, scratch_operands = 0 : i64, tpu.core_type = #tpu.core_type<tc>, window_params = [{transform_indices = @transform_0, window_bounds = array<i64: 128, 16>}, {pipeline_mode = #tpu.pipeline_mode<synchronous>, transform_indices = @transform_1, window_bounds = array<i64: 16, 128>}, {pipeline_mode = #tpu.pipeline_mode<synchronous>, transform_indices = @transform_2, window_bounds = array<i64: 1, 128>}, {pipeline_mode = #tpu.pipeline_mode<synchronous>, transform_indices = @transform_3, window_bounds = array<i64: 128, 32>}, {pipeline_mode = #tpu.pipeline_mode<synchronous>, transform_indices = @transform_4, window_bounds = array<i64: 1, 32>}, {pipeline_mode = #tpu.pipeline_mode<synchronous>, transform_indices = @transform_5, window_bounds = array<i64: 1, 32>}, {transform_indices = @transform_6, window_bounds = array<i64: 1, 1>}, {transform_indices = @transform_7, window_bounds = array<i64: 1, 128>}]} {
    %c0 = arith.constant 0 : index
    %c0_0 = arith.constant 0 : index
    %0 = vector.load %arg1[%c0, %c0_0] : memref<128x16xf32, #tpu.memory_space<vmem>>, vector<128x16xf32>
    %c128_i32 = arith.constant 128 : i32
    %1 = arith.muli %arg0, %c128_i32 : i32
    %2 = tpu.iota {dimensions = array<i32: 0>} : vector<128x16xi32>
    %3 = vector.broadcast %1 : i32 to vector<128x16xi32>
    %4 = arith.addi %3, %2 : vector<128x16xi32>
    %c2_i32 = arith.constant 2 : i32
    %5 = vector.broadcast %c2_i32 : i32 to vector<128x16xi32>
    %6 = arith.cmpi slt, %4, %5 : vector<128x16xi32>
    %cst = arith.constant 0.000000e+00 : f32
    %7 = vector.broadcast %cst : f32 to vector<128x16xf32>
    %8 = arith.select %6, %0, %7 : vector<128x16xi1>, vector<128x16xf32>
    %c0_1 = arith.constant 0 : index
    %c0_2 = arith.constant 0 : index
    %9 = vector.load %arg2[%c0_1, %c0_2] : memref<16x128xf32, #tpu.memory_space<vmem>>, vector<16x128xf32>
    %cst_3 = arith.constant dense<0.000000e+00> : vector<128x128xf32>
    %10 = tpu.matmul %8, %9, %cst_3 {dimension_numbers = #tpu.dot_dimension_numbers<[1], [0], [0], [1], [0, 0, 1, 1], [], []>} : vector<128x16xf32>, vector<16x128xf32>, vector<128x128xf32> -> vector<128x128xf32>
    %c0_4 = arith.constant 0 : index
    %c0_5 = arith.constant 0 : index
    %11 = vector.load %arg3[%c0_4, %c0_5] : memref<1x128xf32, #tpu.memory_space<vmem>>, vector<1x128xf32>
    %12 = vector.broadcast %11 : vector<1x128xf32> to vector<128x128xf32>
    %13 = arith.addf %10, %12 : vector<128x128xf32>
    %14 = math.tanh %13 : vector<128x128xf32>
    %c0_6 = arith.constant 0 : index
    %c0_7 = arith.constant 0 : index
    %15 = vector.load %arg4[%c0_6, %c0_7] : memref<128x32xf32, #tpu.memory_space<vmem>>, vector<128x32xf32>
    %cst_8 = arith.constant dense<0.000000e+00> : vector<128x32xf32>
    %16 = tpu.matmul %14, %15, %cst_8 {dimension_numbers = #tpu.dot_dimension_numbers<[1], [0], [0], [1], [0, 0, 1, 1], [], []>} : vector<128x128xf32>, vector<128x32xf32>, vector<128x32xf32> -> vector<128x32xf32>
    %c0_9 = arith.constant 0 : index
    %c0_10 = arith.constant 0 : index
    %17 = vector.load %arg5[%c0_9, %c0_10] : memref<1x32xf32, #tpu.memory_space<vmem>>, vector<1x32xf32>
    %18 = vector.broadcast %17 : vector<1x32xf32> to vector<128x32xf32>
    %19 = arith.addf %16, %18 : vector<128x32xf32>
    %20 = math.tanh %19 : vector<128x32xf32>
    %c0_11 = arith.constant 0 : index
    %c0_12 = arith.constant 0 : index
    %21 = vector.load %arg6[%c0_11, %c0_12] : memref<1x32xf32, #tpu.memory_space<vmem>>, vector<1x32xf32>
    %cst_13 = arith.constant dense<0.000000e+00> : vector<1x128xf32>
    %22 = tpu.matmul %21, %20, %cst_13 {dimension_numbers = #tpu.dot_dimension_numbers<[1], [1], [0], [0], [0, 0, 1, 0], [], []>} : vector<1x32xf32>, vector<128x32xf32>, vector<1x128xf32> -> vector<1x128xf32>
    %c0_14 = arith.constant 0 : index
    %c0_15 = arith.constant 0 : index
    %23 = memref.load %arg7[%c0_14, %c0_15] : memref<1x1xf32, #tpu.memory_space<smem>>
    %24 = vector.broadcast %23 : f32 to vector<1x128xf32>
    %25 = arith.addf %22, %24 : vector<1x128xf32>
    %c0_16 = arith.constant 0 : index
    %c0_17 = arith.constant 0 : index
    %26 = vector.load %arg8[%c0_16, %c0_17] : memref<1x128xf32, #tpu.memory_space<vmem>>, vector<1x128xf32>
    tpu.vector_store %arg8[%c0_16, %c0_17], %25 {strides = array<i32>} : memref<1x128xf32, #tpu.memory_space<vmem>>, vector<1x128xf32>,
    return
  }
  func.func @transform_0(%arg0: i32) -> (i32, i32) {
    %c0_i32 = arith.constant 0 : i32
    %c0_i32_0 = arith.constant 0 : i32
    return %arg0, %c0_i32 : i32, i32
  }
  func.func @transform_1(%arg0: i32) -> (i32, i32) {
    %c0_i32 = arith.constant 0 : i32
    %c0_i32_0 = arith.constant 0 : i32
    %c0_i32_1 = arith.constant 0 : i32
    return %c0_i32, %c0_i32_0 : i32, i32
  }
  func.func @transform_2(%arg0: i32) -> (i32, i32) {
    %c0_i32 = arith.constant 0 : i32
    %c0_i32_0 = arith.constant 0 : i32
    %c0_i32_1 = arith.constant 0 : i32
    return %c0_i32, %c0_i32_0 : i32, i32
  }
  func.func @transform_3(%arg0: i32) -> (i32, i32) {
    %c0_i32 = arith.constant 0 : i32
    %c0_i32_0 = arith.constant 0 : i32
    %c0_i32_1 = arith.constant 0 : i32
    return %c0_i32, %c0_i32_0 : i32, i32
  }
  func.func @transform_4(%arg0: i32) -> (i32, i32) {
    %c0_i32 = arith.constant 0 : i32
    %c0_i32_0 = arith.constant 0 : i32
    %c0_i32_1 = arith.constant 0 : i32
    return %c0_i32, %c0_i32_0 : i32, i32
  }
  func.func @transform_5(%arg0: i32) -> (i32, i32) {
    %c0_i32 = arith.constant 0 : i32
    %c0_i32_0 = arith.constant 0 : i32
    %c0_i32_1 = arith.constant 0 : i32
    return %c0_i32, %c0_i32_0 : i32, i32
  }
  func.func @transform_6(%arg0: i32) -> (i32, i32) {
    %c0_i32 = arith.constant 0 : i32
    %c0_i32_0 = arith.constant 0 : i32
    %c0_i32_1 = arith.constant 0 : i32
    return %c0_i32, %c0_i32_0 : i32, i32
  }
  func.func @transform_7(%arg0: i32) -> (i32, i32) {
    %c0_i32 = arith.constant 0 : i32
    %c0_i32_0 = arith.constant 0 : i32
    return %c0_i32, %arg0 : i32, i32
  }
}

</mosaic_0001>

<llo_original>
// kernel: tpu_custom_call.1
$region0: #{tpu_custom_call.1}
  #allocation0 [shape = 'u32[]', space=smem, size = 0x4, offset = 0x4, fixed_abs, tag = 'smem constant byte address 0x4 - core index']
  #allocation1 [shape = 'u32[144,128]{1,0:T(1,128)}', space=vmem, size = 0x12000, scoped, tag = 'internal scratch']
  #allocation2 [shape = 'f32[1,1]{1,0:T(1,128)S(6)}', space=smem, size = 0x200, scoped, tag = 'scoped memory for tpu_custom_call.1']
  %s0 = inlined_call_operand.vmem [shape: f32[2,16], index: 0, kind: input, shape index: {}]
  %s1 = inlined_call_operand.vmem [shape: f32[16,128], index: 1, kind: input, shape index: {}]
  %s2 = inlined_call_operand.vmem [shape: f32[1,128], index: 2, kind: input, shape index: {}]
  %s3 = inlined_call_operand.vmem [shape: f32[128,32], index: 3, kind: input, shape index: {}]
  %s4 = inlined_call_operand.vmem [shape: f32[1,32], index: 4, kind: input, shape index: {}]
  %s5 = inlined_call_operand.vmem [shape: f32[1,32], index: 5, kind: input, shape index: {}]
  %s6 = inlined_call_operand.<no memory space> [shape: f32[1,1], index: 6, kind: input, shape index: {}]
  %s7 = inlined_call_operand.hbm [shape: f32[1,2], index: 7, kind: output, shape index: {}]
  %s8 = sld [smem:[#allocation0]]
  $region38: #{tpu_custom_call.1} parent=0
    _
  %s10 = ssub.s32 1, %s8
  %s11 = scalar_select 0, %s10, %s8
  %12 = sst [smem:[#allocation2]] %s6
  $region1: #{tpu_custom_call.1} parent=0
    #allocation3 [shape = 'u8[512]{0}', space=vmem, size = 0x400, scoped, tag = 'output window, operand 0, single buffered']
    #allocation4 [shape = 's32[1]{0}', space=sflag, size = 0x4, scoped, tag = 'scoped memory for tpu_custom_call.1']
    %13 = vsyncpa [#allocation4], 0
    // Predicated region
    $region2: #{tpu_custom_call.1} parent=1 // pred_check
      _
    $region3: #{tpu_custom_call.1} parent=1 // pred_check_branch
      %15 = sbr.rel (0) target = $region5
    $region4: #{tpu_custom_call.1} parent=1 // pred_region
      _
    $region5: #{tpu_custom_call.1} parent=1 // pred_fallthru
      _
    // Predicated region
    $region6: #{tpu_custom_call.1} parent=1 // pred_check
      _
    $region7: #{tpu_custom_call.1} parent=1 // pred_check_branch
      %17 = sbr.rel (0) target = $region9
    $region8: #{tpu_custom_call.1} parent=1 // pred_region
      _
    $region9: #{tpu_custom_call.1} parent=1 // pred_fallthru
      _
    // Predicated region
    $region10: #{tpu_custom_call.1} parent=1 // pred_check
      _
    $region11: #{tpu_custom_call.1} parent=1 // pred_check_branch
      %19 = sbr.rel (0) target = $region13
    $region12: #{tpu_custom_call.1} parent=1 // pred_region
      _
    $region13: #{tpu_custom_call.1} parent=1 // pred_fallthru
      _
    // Predicated region
    $region14: #{tpu_custom_call.1} parent=1 // pred_check
      _
    $region15: #{tpu_custom_call.1} parent=1 // pred_check_branch
      %21 = sbr.rel (0) target = $region17
    $region16: #{tpu_custom_call.1} parent=1 // pred_region
      _
    $region17: #{tpu_custom_call.1} parent=1 // pred_fallthru
      _
    // Predicated region
    $region18: #{tpu_custom_call.1} parent=1 // pred_check
      _
    $region19: #{tpu_custom_call.1} parent=1 // pred_check_branch
      %23 = sbr.rel (0) target = $region21
    $region20: #{tpu_custom_call.1} parent=1 // pred_region
      _
    $region21: #{tpu_custom_call.1} parent=1 // pred_fallthru
      _
    // Predicated region
    $region22: #{tpu_custom_call.1} parent=1 // pred_check
      _
    $region23: #{tpu_custom_call.1} parent=1 // pred_check_branch
      %25 = sbr.rel (0) target = $region25
    $region24: #{tpu_custom_call.1} parent=1 // pred_region
      _
    $region25: #{tpu_custom_call.1} parent=1 // pred_fallthru
      _
    // Predicated region
    $region26: #{tpu_custom_call.1} parent=1 // pred_check
      _
    $region27: #{tpu_custom_call.1} parent=1 // pred_check_branch
      %27 = sbr.rel (0) target = $region29
    $region28: #{tpu_custom_call.1} parent=1 // pred_region
      _
    $region29: #{tpu_custom_call.1} parent=1 // pred_fallthru
      _
    %v28 = vld [vmem:[%s0] sm:$0xff]
    %v29 = vld [vmem:[%s0 + $0x8] sm:$0xff]
    %v30 = vld [vmem:[%s0 + $0x10] sm:$0xff]
    %v31 = vld [vmem:[%s0 + $0x18] sm:$0xff]
    %v32 = vld [vmem:[%s0 + $0x20] sm:$0xff]
    %v33 = vld [vmem:[%s0 + $0x28] sm:$0xff]
    %v34 = vld [vmem:[%s0 + $0x30] sm:$0xff]
    %v35 = vld [vmem:[%s0 + $0x38] sm:$0xff]
    %v36 = vld [vmem:[%s0 + $0x40] sm:$0xff]
    %v37 = vld [vmem:[%s0 + $0x48] sm:$0xff]
    %v38 = vld [vmem:[%s0 + $0x50] sm:$0xff]
    %v39 = vld [vmem:[%s0 + $0x58] sm:$0xff]
    %v40 = vld [vmem:[%s0 + $0x60] sm:$0xff]
    %v41 = vld [vmem:[%s0 + $0x68] sm:$0xff]
    %v42 = vld [vmem:[%s0 + $0x70] sm:$0xff]
    %v43 = vld [vmem:[%s0 + $0x78] sm:$0xff]
    %s44 = smul.u32 0, 128
    %v45 = vlaneseq
    %v46 = vshrl.u32 %v45, 7
    %v47 = vadd.s32 %v46, 8
    %v48 = vadd.s32 %v46, 16
    %v49 = vadd.s32 %v46, 24
    %v50 = vadd.s32 %v46, 32
    %v51 = vadd.s32 %v46, 40
    %v52 = vadd.s32 %v46, 48
    %v53 = vadd.s32 %v46, 56
    %v54 = vadd.s32 %v46, 64
    %v55 = vadd.s32 %v46, 72
    %v56 = vadd.s32 %v46, 80
    %v57 = vadd.s32 %v46, 88
    %v58 = vadd.s32 %v46, 96
    %v59 = vadd.s32 %v46, 104
    %v60 = vadd.s32 %v46, 112
    %v61 = vadd.s32 %v46, 120
    %v62 = vstv %s44
    %v63 = vadd.s32 %v62, %v46
    %v64 = vadd.s32 %v62, %v47
    %v65 = vadd.s32 %v62, %v48
    %v66 = vadd.s32 %v62, %v49
    %v67 = vadd.s32 %v62, %v50
    %v68 = vadd.s32 %v62, %v51
    %v69 = vadd.s32 %v62, %v52
    %v70 = vadd.s32 %v62, %v53
    %v71 = vadd.s32 %v62, %v54
    %v72 = vadd.s32 %v62, %v55
    %v73 = vadd.s32 %v62, %v56
    %v74 = vadd.s32 %v62, %v57
    %v75 = vadd.s32 %v62, %v58
    %v76 = vadd.s32 %v62, %v59
    %v77 = vadd.s32 %v62, %v60
    %v78 = vadd.s32 %v62, %v61
    %vm79 = vcmp.lt.s32.totalorder %v63, 2
    %vm80 = vcmp.lt.s32.totalorder %v64, 2
    %vm81 = vcmp.lt.s32.totalorder %v65, 2
    %vm82 = vcmp.lt.s32.totalorder %v66, 2
    %vm83 = vcmp.lt.s32.totalorder %v67, 2
    %vm84 = vcmp.lt.s32.totalorder %v68, 2
    %vm85 = vcmp.lt.s32.totalorder %v69, 2
    %vm86 = vcmp.lt.s32.totalorder %v70, 2
    %vm87 = vcmp.lt.s32.totalorder %v71, 2
    %vm88 = vcmp.lt.s32.totalorder %v72, 2
    %vm89 = vcmp.lt.s32.totalorder %v73, 2
    %vm90 = vcmp.lt.s32.totalorder %v74, 2
    %vm91 = vcmp.lt.s32.totalorder %v75, 2
    %vm92 = vcmp.lt.s32.totalorder %v76, 2
    %vm93 = vcmp.lt.s32.totalorder %v77, 2
    %vm94 = vcmp.lt.s32.totalorder %v78, 2
    %v95 = vsel %vm79, %v28, 0.0
    %v96 = vsel %vm80, %v29, 0.0
    %v97 = vsel %vm81, %v30, 0.0
    %v98 = vsel %vm82, %v31, 0.0
    %v99 = vsel %vm83, %v32, 0.0
    %v100 = vsel %vm84, %v33, 0.0
    %v101 = vsel %vm85, %v34, 0.0
    %v102 = vsel %vm86, %v35, 0.0
    %v103 = vsel %vm87, %v36, 0.0
    %v104 = vsel %vm88, %v37, 0.0
    %v105 = vsel %vm89, %v38, 0.0
    %v106 = vsel %vm90, %v39, 0.0
    %v107 = vsel %vm91, %v40, 0.0
    %v108 = vsel %vm92, %v41, 0.0
    %v109 = vsel %vm93, %v42, 0.0
    %v110 = vsel %vm94, %v43, 0.0
    %v111 = vld [vmem:[%s1] sm:$0xff]
    %v112 = vld [vmem:[%s1 + $0x8] sm:$0xff]
    %v113 = vld [vmem:[%s2] sm:$0x1]
    %v115 = vlaneseq
    %v116 = vshrl.u32 %v115, 7
    %v117 = vsub.s32 0, %v116
    %v118 = vrot.slane %v113, %v117
    %vm120 = vcmask 130048
    %v122 = vsel %vm120, %v95, 0
    %v125 = vsel %vm120, %v96, 0
    %v128 = vsel %vm120, %v97, 0
    %v131 = vsel %vm120, %v98, 0
    %v134 = vsel %vm120, %v99, 0
    %v137 = vsel %vm120, %v100, 0
    %v140 = vsel %vm120, %v101, 0
    %v143 = vsel %vm120, %v102, 0
    %v146 = vsel %vm120, %v103, 0
    %v149 = vsel %vm120, %v104, 0
    %v152 = vsel %vm120, %v105, 0
    %v155 = vsel %vm120, %v106, 0
    %v158 = vsel %vm120, %v107, 0
    %v161 = vsel %vm120, %v108, 0
    %v164 = vsel %vm120, %v109, 0
    %v167 = vsel %vm120, %v110, 0
    %169 = vmatprep.subr.mxu0 0.0
    %170 = vmatpush1.msra.mxu0 %v111
    %171 = vmatprep.subr.mxu0 0.0
    %172 = vmatpush1.msra.mxu0 %v112
    %173 = vmatprep.subr.mxu0 0.0
    %174 = vmatpush1.msra.mxu0 0.0
    %175 = vmatprep.subr.mxu0 0.0
    %176 = vmatpush1.msra.mxu0 0.0
    %177 = vmatprep.subr.mxu0 0.0
    %178 = vmatpush1.msra.mxu0 0.0
    %179 = vmatprep.subr.mxu0 0.0
    %180 = vmatpush1.msra.mxu0 0.0
    %181 = vmatprep.subr.mxu0 0.0
    %182 = vmatpush1.msra.mxu0 0.0
    %183 = vmatprep.subr.mxu0 0.0
    %184 = vmatpush1.msra.mxu0 0.0
    %185 = vmatprep.subr.mxu0 0.0
    %186 = vmatpush1.msra.mxu0 0.0
    %187 = vmatprep.subr.mxu0 0.0
    %188 = vmatpush1.msra.mxu0 0.0
    %189 = vmatprep.subr.mxu0 0.0
    %190 = vmatpush1.msra.mxu0 0.0
    %191 = vmatprep.subr.mxu0 0.0
    %192 = vmatpush1.msra.mxu0 0.0
    %193 = vmatprep.subr.mxu0 0.0
    %194 = vmatpush1.msra.mxu0 0.0
    %195 = vmatprep.subr.mxu0 0.0
    %196 = vmatpush1.msra.mxu0 0.0
    %197 = vmatprep.subr.mxu0 0.0
    %198 = vmatpush1.msra.mxu0 0.0
    %199 = vmatprep.subr.mxu0 0.0
    %200 = vmatpush1.msra.mxu0 0.0
    %201 = vmatprep.subr.mxu0 0.0
    %202 = vmatpush1.msra.mxu0 0.0
    %203 = vmatprep.subr.mxu0 0.0
    %204 = vmatpush1.msra.mxu0 0.0
    %205 = vmatprep.subr.mxu0 0.0
    %206 = vmatpush1.msra.mxu0 0.0
    %207 = vmatprep.subr.mxu0 0.0
    %208 = vmatpush1.msra.mxu0 0.0
    %209 = vmatprep.subr.mxu0 0.0
    %210 = vmatpush1.msra.mxu0 0.0
    %211 = vmatprep.subr.mxu0 0.0
    %212 = vmatpush1.msra.mxu0 0.0
    %213 = vmatprep.subr.mxu0 0.0
    %214 = vmatpush1.msra.mxu0 0.0
    %215 = vmatprep.subr.mxu0 0.0
    %216 = vmatpush1.msra.mxu0 0.0
    %217 = vmatprep.subr.mxu0 0.0
    %218 = vmatpush1.msra.mxu0 0.0
    %219 = vmatprep.subr.mxu0 0.0
    %220 = vmatpush1.msra.mxu0 0.0
    %221 = vmatprep.subr.mxu0 0.0
    %222 = vmatpush1.msra.mxu0 0.0
    %223 = vmatprep.subr.mxu0 0.0
    %224 = vmatpush1.msra.mxu0 0.0
    %225 = vmatprep.subr.mxu0 0.0
    %226 = vmatpush1.msra.mxu0 0.0
    %227 = vmatprep.subr.mxu0 0.0
    %228 = vmatpush1.msra.mxu0 0.0
    %229 = vmatprep.subr.mxu0 0.0
    %230 = vmatpush1.msra.mxu0 0.0
    %231 = vmatprep.subr.mxu0 0.0
    %232 = vmatpush1.msra.mxu0 0.0
    %233 = vmatprep.mubr.f32.mxu0 0.0
    %234 = vmatmul.mubr.f32.gmra.mrb[0].mxu0 %v122
    %v235 = vpop.f32.mrb[0].mxu0
    %v236 = vadd.f32 %v118, %v235
    %v237 = vpop.f32.mrb[0].mxu0
    %238 = vmatprep.mubr.f32.mxu0 0.0
    %239 = vmatmul.mubr.f32.gmra.mrb[0].mxu0 %v125
    %v240 = vpop.f32.mrb[0].mxu0
    %v241 = vadd.f32 %v118, %v240
    %v242 = vpop.f32.mrb[0].mxu0
    %243 = vmatprep.mubr.f32.mxu0 0.0
    %244 = vmatmul.mubr.f32.gmra.mrb[0].mxu0 %v128
    %v245 = vpop.f32.mrb[0].mxu0
    %v246 = vadd.f32 %v118, %v245
    %v247 = vpop.f32.mrb[0].mxu0
    %248 = vmatprep.mubr.f32.mxu0 0.0
    %249 = vmatmul.mubr.f32.gmra.mrb[0].mxu0 %v131
    %v250 = vpop.f32.mrb[0].mxu0
    %v251 = vadd.f32 %v118, %v250
    %v252 = vpop.f32.mrb[0].mxu0
    %253 = vmatprep.mubr.f32.mxu0 0.0
    %254 = vmatmul.mubr.f32.gmra.mrb[0].mxu0 %v134
    %v255 = vpop.f32.mrb[0].mxu0
    %v256 = vadd.f32 %v118, %v255
    %v257 = vpop.f32.mrb[0].mxu0
    %258 = vmatprep.mubr.f32.mxu0 0.0
    %259 = vmatmul.mubr.f32.gmra.mrb[0].mxu0 %v137
    %v260 = vpop.f32.mrb[0].mxu0
    %v261 = vadd.f32 %v118, %v260
    %v262 = vpop.f32.mrb[0].mxu0
    %263 = vmatprep.mubr.f32.mxu0 0.0
    %264 = vmatmul.mubr.f32.gmra.mrb[0].mxu0 %v140
    %v265 = vpop.f32.mrb[0].mxu0
    %v266 = vadd.f32 %v118, %v265
    %v267 = vpop.f32.mrb[0].mxu0
    %268 = vmatprep.mubr.f32.mxu0 0.0
    %269 = vmatmul.mubr.f32.gmra.mrb[0].mxu0 %v143
    %v270 = vpop.f32.mrb[0].mxu0
    %v271 = vadd.f32 %v118, %v270
    %v272 = vpop.f32.mrb[0].mxu0
    %273 = vmatprep.mubr.f32.mxu0 0.0
    %274 = vmatmul.mubr.f32.gmra.mrb[0].mxu0 %v146
    %v275 = vpop.f32.mrb[0].mxu0
    %v276 = vadd.f32 %v118, %v275
    %v277 = vpop.f32.mrb[0].mxu0
    %278 = vmatprep.mubr.f32.mxu0 0.0
    %279 = vmatmul.mubr.f32.gmra.mrb[0].mxu0 %v149
    %v280 = vpop.f32.mrb[0].mxu0
    %v281 = vadd.f32 %v118, %v280
    %v282 = vpop.f32.mrb[0].mxu0
    %283 = vmatprep.mubr.f32.mxu0 0.0
    %284 = vmatmul.mubr.f32.gmra.mrb[0].mxu0 %v152
    %v285 = vpop.f32.mrb[0].mxu0
    %v286 = vadd.f32 %v118, %v285
    %v287 = vpop.f32.mrb[0].mxu0
    %288 = vmatprep.mubr.f32.mxu0 0.0
    %289 = vmatmul.mubr.f32.gmra.mrb[0].mxu0 %v155
    %v290 = vpop.f32.mrb[0].mxu0
    %v291 = vadd.f32 %v118, %v290
    %v292 = vpop.f32.mrb[0].mxu0
    %293 = vmatprep.mubr.f32.mxu0 0.0
    %294 = vmatmul.mubr.f32.gmra.mrb[0].mxu0 %v158
    %v295 = vpop.f32.mrb[0].mxu0
    %v296 = vadd.f32 %v118, %v295
    %v297 = vpop.f32.mrb[0].mxu0
    %298 = vmatprep.mubr.f32.mxu0 0.0
    %299 = vmatmul.mubr.f32.gmra.mrb[0].mxu0 %v161
    %v300 = vpop.f32.mrb[0].mxu0
    %v301 = vadd.f32 %v118, %v300
    %v302 = vpop.f32.mrb[0].mxu0
    %303 = vmatprep.mubr.f32.mxu0 0.0
    %304 = vmatmul.mubr.f32.gmra.mrb[0].mxu0 %v164
    %v305 = vpop.f32.mrb[0].mxu0
    %v306 = vadd.f32 %v118, %v305
    %v307 = vpop.f32.mrb[0].mxu0
    %308 = vmatprep.mubr.f32.mxu0 0.0
    %309 = vmatmul.mubr.f32.gmra.mrb[0].mxu0 %v167
    %v310 = vpop.f32.mrb[0].mxu0
    %v311 = vadd.f32 %v118, %v310
    %v312 = vpop.f32.mrb[0].mxu0
    %313 = vdwg.mxu0
    %v314 = vtanh.pop %v236
    %v315 = vtanh.pop %v241
    %v316 = vtanh.pop %v246
    %v317 = vtanh.pop %v251
    %v318 = vtanh.pop %v256
    %v319 = vtanh.pop %v261
    %v320 = vtanh.pop %v266
    %v321 = vtanh.pop %v271
    %v322 = vtanh.pop %v276
    %v323 = vtanh.pop %v281
    %v324 = vtanh.pop %v286
    %v325 = vtanh.pop %v291
    %v326 = vtanh.pop %v296
    %v327 = vtanh.pop %v301
    %v328 = vtanh.pop %v306
    %v329 = vtanh.pop %v311
    %v330 = vld [vmem:[%s3] sm:$0xff]
    %v331 = vld [vmem:[%s3 + $0x8] sm:$0xff]
    %v332 = vld [vmem:[%s3 + $0x10] sm:$0xff]
    %v333 = vld [vmem:[%s3 + $0x18] sm:$0xff]
    %v334 = vld [vmem:[%s3 + $0x20] sm:$0xff]
    %v335 = vld [vmem:[%s3 + $0x28] sm:$0xff]
    %v336 = vld [vmem:[%s3 + $0x30] sm:$0xff]
    %v337 = vld [vmem:[%s3 + $0x38] sm:$0xff]
    %v338 = vld [vmem:[%s3 + $0x40] sm:$0xff]
    %v339 = vld [vmem:[%s3 + $0x48] sm:$0xff]
    %v340 = vld [vmem:[%s3 + $0x50] sm:$0xff]
    %v341 = vld [vmem:[%s3 + $0x58] sm:$0xff]
    %v342 = vld [vmem:[%s3 + $0x60] sm:$0xff]
    %v343 = vld [vmem:[%s3 + $0x68] sm:$0xff]
    %v344 = vld [vmem:[%s3 + $0x70] sm:$0xff]
    %v345 = vld [vmem:[%s3 + $0x78] sm:$0xff]
    %v346 = vld [vmem:[%s4] sm:$0x1]
    %v348 = vlaneseq
    %v349 = vshrl.u32 %v348, 7
    %v350 = vsub.s32 0, %v349
    %v351 = vrot.slane %v346, %v350
    %353 = vmatprep.subr.mxu0 0.0
    %354 = vmatpush1.msra.mxu0 %v330
    %355 = vmatprep.subr.mxu0 0.0
    %356 = vmatpush1.msra.mxu0 %v331
    %357 = vmatprep.subr.mxu0 0.0
    %358 = vmatpush1.msra.mxu0 %v332
    %359 = vmatprep.subr.mxu0 0.0
    %360 = vmatpush1.msra.mxu0 %v333
    %361 = vmatprep.subr.mxu0 0.0
    %362 = vmatpush1.msra.mxu0 %v334
    %363 = vmatprep.subr.mxu0 0.0
    %364 = vmatpush1.msra.mxu0 %v335
    %365 = vmatprep.subr.mxu0 0.0
    %366 = vmatpush1.msra.mxu0 %v336
    %367 = vmatprep.subr.mxu0 0.0
    %368 = vmatpush1.msra.mxu0 %v337
    %369 = vmatprep.subr.mxu0 0.0
    %370 = vmatpush1.msra.mxu0 %v338
    %371 = vmatprep.subr.mxu0 0.0
    %372 = vmatpush1.msra.mxu0 %v339
    %373 = vmatprep.subr.mxu0 0.0
    %374 = vmatpush1.msra.mxu0 %v340
    %375 = vmatprep.subr.mxu0 0.0
    %376 = vmatpush1.msra.mxu0 %v341
    %377 = vmatprep.subr.mxu0 0.0
    %378 = vmatpush1.msra.mxu0 %v342
    %379 = vmatprep.subr.mxu0 0.0
    %380 = vmatpush1.msra.mxu0 %v343
    %381 = vmatprep.subr.mxu0 0.0
    %382 = vmatpush1.msra.mxu0 %v344
    %383 = vmatprep.subr.mxu0 0.0
    %384 = vmatpush1.msra.mxu0 %v345
    %385 = vmatprep.subr.mxu0 0.0
    %386 = vmatpush1.msra.mxu0 0.0
    %387 = vmatprep.subr.mxu0 0.0
    %388 = vmatpush1.msra.mxu0 0.0
    %389 = vmatprep.subr.mxu0 0.0
    %390 = vmatpush1.msra.mxu0 0.0
    %391 = vmatprep.subr.mxu0 0.0
    %392 = vmatpush1.msra.mxu0 0.0
    %393 = vmatprep.subr.mxu0 0.0
    %394 = vmatpush1.msra.mxu0 0.0
    %395 = vmatprep.subr.mxu0 0.0
    %396 = vmatpush1.msra.mxu0 0.0
    %397 = vmatprep.subr.mxu0 0.0
    %398 = vmatpush1.msra.mxu0 0.0
    %399 = vmatprep.subr.mxu0 0.0
    %400 = vmatpush1.msra.mxu0 0.0
    %401 = vmatprep.subr.mxu0 0.0
    %402 = vmatpush1.msra.mxu0 0.0
    %403 = vmatprep.subr.mxu0 0.0
    %404 = vmatpush1.msra.mxu0 0.0
    %405 = vmatprep.subr.mxu0 0.0
    %406 = vmatpush1.msra.mxu0 0.0
    %407 = vmatprep.subr.mxu0 0.0
    %408 = vmatpush1.msra.mxu0 0.0
    %409 = vmatprep.subr.mxu0 0.0
    %410 = vmatpush1.msra.mxu0 0.0
    %411 = vmatprep.subr.mxu0 0.0
    %412 = vmatpush1.msra.mxu0 0.0
    %413 = vmatprep.subr.mxu0 0.0
    %414 = vmatpush1.msra.mxu0 0.0
    %415 = vmatprep.subr.mxu0 0.0
    %416 = vmatpush1.msra.mxu0 0.0
    %417 = vmatprep.mubr.f32.mxu0 0.0
    %418 = vmatmul.mubr.f32.gmra.mrb[0].mxu0 %v314
    %v419 = vpop.f32.mrb[0].mxu0
    %v420 = vadd.f32 %v351, %v419
    %v421 = vpop.f32.mrb[0].mxu0
    %422 = vmatprep.mubr.f32.mxu0 0.0
    %423 = vmatmul.mubr.f32.gmra.mrb[0].mxu0 %v315
    %v424 = vpop.f32.mrb[0].mxu0
    %v425 = vadd.f32 %v351, %v424
    %v426 = vpop.f32.mrb[0].mxu0
    %427 = vmatprep.mubr.f32.mxu0 0.0
    %428 = vmatmul.mubr.f32.gmra.mrb[0].mxu0 %v316
    %v429 = vpop.f32.mrb[0].mxu0
    %v430 = vadd.f32 %v351, %v429
    %v431 = vpop.f32.mrb[0].mxu0
    %432 = vmatprep.mubr.f32.mxu0 0.0
    %433 = vmatmul.mubr.f32.gmra.mrb[0].mxu0 %v317
    %v434 = vpop.f32.mrb[0].mxu0
    %v435 = vadd.f32 %v351, %v434
    %v436 = vpop.f32.mrb[0].mxu0
    %437 = vmatprep.mubr.f32.mxu0 0.0
    %438 = vmatmul.mubr.f32.gmra.mrb[0].mxu0 %v318
    %v439 = vpop.f32.mrb[0].mxu0
    %v440 = vadd.f32 %v351, %v439
    %v441 = vpop.f32.mrb[0].mxu0
    %442 = vmatprep.mubr.f32.mxu0 0.0
    %443 = vmatmul.mubr.f32.gmra.mrb[0].mxu0 %v319
    %v444 = vpop.f32.mrb[0].mxu0
    %v445 = vadd.f32 %v351, %v444
    %v446 = vpop.f32.mrb[0].mxu0
    %447 = vmatprep.mubr.f32.mxu0 0.0
    %448 = vmatmul.mubr.f32.gmra.mrb[0].mxu0 %v320
    %v449 = vpop.f32.mrb[0].mxu0
    %v450 = vadd.f32 %v351, %v449
    %v451 = vpop.f32.mrb[0].mxu0
    %452 = vmatprep.mubr.f32.mxu0 0.0
    %453 = vmatmul.mubr.f32.gmra.mrb[0].mxu0 %v321
    %v454 = vpop.f32.mrb[0].mxu0
    %v455 = vadd.f32 %v351, %v454
    %v456 = vpop.f32.mrb[0].mxu0
    %457 = vmatprep.mubr.f32.mxu0 0.0
    %458 = vmatmul.mubr.f32.gmra.mrb[0].mxu0 %v322
    %v459 = vpop.f32.mrb[0].mxu0
    %v460 = vadd.f32 %v351, %v459
    %v461 = vpop.f32.mrb[0].mxu0
    %462 = vmatprep.mubr.f32.mxu0 0.0
    %463 = vmatmul.mubr.f32.gmra.mrb[0].mxu0 %v323
    %v464 = vpop.f32.mrb[0].mxu0
    %v465 = vadd.f32 %v351, %v464
    %v466 = vpop.f32.mrb[0].mxu0
    %467 = vmatprep.mubr.f32.mxu0 0.0
    %468 = vmatmul.mubr.f32.gmra.mrb[0].mxu0 %v324
    %v469 = vpop.f32.mrb[0].mxu0
    %v470 = vadd.f32 %v351, %v469
    %v471 = vpop.f32.mrb[0].mxu0
    %472 = vmatprep.mubr.f32.mxu0 0.0
    %473 = vmatmul.mubr.f32.gmra.mrb[0].mxu0 %v325
    %v474 = vpop.f32.mrb[0].mxu0
    %v475 = vadd.f32 %v351, %v474
    %v476 = vpop.f32.mrb[0].mxu0
    %477 = vmatprep.mubr.f32.mxu0 0.0
    %478 = vmatmul.mubr.f32.gmra.mrb[0].mxu0 %v326
    %v479 = vpop.f32.mrb[0].mxu0
    %v480 = vadd.f32 %v351, %v479
    %v481 = vpop.f32.mrb[0].mxu0
    %482 = vmatprep.mubr.f32.mxu0 0.0
    %483 = vmatmul.mubr.f32.gmra.mrb[0].mxu0 %v327
    %v484 = vpop.f32.mrb[0].mxu0
    %v485 = vadd.f32 %v351, %v484
    %v486 = vpop.f32.mrb[0].mxu0
    %487 = vmatprep.mubr.f32.mxu0 0.0
    %488 = vmatmul.mubr.f32.gmra.mrb[0].mxu0 %v328
    %v489 = vpop.f32.mrb[0].mxu0
    %v490 = vadd.f32 %v351, %v489
    %v491 = vpop.f32.mrb[0].mxu0
    %492 = vmatprep.mubr.f32.mxu0 0.0
    %493 = vmatmul.mubr.f32.gmra.mrb[0].mxu0 %v329
    %v494 = vpop.f32.mrb[0].mxu0
    %v495 = vadd.f32 %v351, %v494
    %v496 = vpop.f32.mrb[0].mxu0
    %497 = vdwg.mxu0
    %v498 = vtanh.pop %v420
    %v499 = vtanh.pop %v425
    %v500 = vtanh.pop %v430
    %v501 = vtanh.pop %v435
    %v502 = vtanh.pop %v440
    %v503 = vtanh.pop %v445
    %v504 = vtanh.pop %v450
    %v505 = vtanh.pop %v455
    %v506 = vtanh.pop %v460
    %v507 = vtanh.pop %v465
    %v508 = vtanh.pop %v470
    %v509 = vtanh.pop %v475
    %v510 = vtanh.pop %v480
    %v511 = vtanh.pop %v485
    %v512 = vtanh.pop %v490
    %v513 = vtanh.pop %v495
    %v514 = vld [vmem:[%s5] sm:$0x1]
    %s515 = sld [smem:[#allocation2]]
    %v516 = vstv %s515
    %vm517 = vcmask 261120
    %v519 = vsel %vm517, %v514, 0
    %v522 = vsel %vm517, %v498, 0
    %v525 = vsel %vm517, %v499, 0
    %v528 = vsel %vm517, %v500, 0
    %v531 = vsel %vm517, %v501, 0
    %v534 = vsel %vm517, %v502, 0
    %v537 = vsel %vm517, %v503, 0
    %v540 = vsel %vm517, %v504, 0
    %v543 = vsel %vm517, %v505, 0
    %v546 = vsel %vm517, %v506, 0
    %v549 = vsel %vm517, %v507, 0
    %v552 = vsel %vm517, %v508, 0
    %v555 = vsel %vm517, %v509, 0
    %v558 = vsel %vm517, %v510, 0
    %v561 = vsel %vm517, %v511, 0
    %v564 = vsel %vm517, %v512, 0
    %v567 = vsel %vm517, %v513, 0
    %569 = vmatprep.subr.mxu0 0.0
    %570 = vmatpush1.xpose.msra.mxu0 %v522
    %571 = vmatprep.subr.mxu0 0.0
    %572 = vmatpush1.xpose.msra.mxu0 %v525
    %573 = vmatprep.subr.mxu0 0.0
    %574 = vmatpush1.xpose.msra.mxu0 %v528
    %575 = vmatprep.subr.mxu0 0.0
    %576 = vmatpush1.xpose.msra.mxu0 %v531
    %577 = vmatprep.subr.mxu0 0.0
    %578 = vmatpush1.xpose.msra.mxu0 %v534
    %579 = vmatprep.subr.mxu0 0.0
    %580 = vmatpush1.xpose.msra.mxu0 %v537
    %581 = vmatprep.subr.mxu0 0.0
    %582 = vmatpush1.xpose.msra.mxu0 %v540
    %583 = vmatprep.subr.mxu0 0.0
    %584 = vmatpush1.xpose.msra.mxu0 %v543
    %585 = vmatprep.subr.mxu0 0.0
    %586 = vmatpush1.xpose.msra.mxu0 %v546
    %587 = vmatprep.subr.mxu0 0.0
    %588 = vmatpush1.xpose.msra.mxu0 %v549
    %589 = vmatprep.subr.mxu0 0.0
    %590 = vmatpush1.xpose.msra.mxu0 %v552
    %591 = vmatprep.subr.mxu0 0.0
    %592 = vmatpush1.xpose.msra.mxu0 %v555
    %593 = vmatprep.subr.mxu0 0.0
    %594 = vmatpush1.xpose.msra.mxu0 %v558
    %595 = vmatprep.subr.mxu0 0.0
    %596 = vmatpush1.xpose.msra.mxu0 %v561
    %597 = vmatprep.subr.mxu0 0.0
    %598 = vmatpush1.xpose.msra.mxu0 %v564
    %599 = vmatprep.subr.mxu0 0.0
    %600 = vmatpush1.xpose.msra.mxu0 %v567
    %601 = vmatprep.subr.mxu0 0.0
    %602 = vmatpush1.xpose.msra.mxu0 0.0
    %603 = vmatprep.subr.mxu0 0.0
    %604 = vmatpush1.xpose.msra.mxu0 0.0
    %605 = vmatprep.subr.mxu0 0.0
    %606 = vmatpush1.xpose.msra.mxu0 0.0
    %607 = vmatprep.subr.mxu0 0.0
    %608 = vmatpush1.xpose.msra.mxu0 0.0
    %609 = vmatprep.subr.mxu0 0.0
    %610 = vmatpush1.xpose.msra.mxu0 0.0
    %611 = vmatprep.subr.mxu0 0.0
    %612 = vmatpush1.xpose.msra.mxu0 0.0
    %613 = vmatprep.subr.mxu0 0.0
    %614 = vmatpush1.xpose.msra.mxu0 0.0
    %615 = vmatprep.subr.mxu0 0.0
    %616 = vmatpush1.xpose.msra.mxu0 0.0
    %617 = vmatprep.subr.mxu0 0.0
    %618 = vmatpush1.xpose.msra.mxu0 0.0
    %619 = vmatprep.subr.mxu0 0.0
    %620 = vmatpush1.xpose.msra.mxu0 0.0
    %621 = vmatprep.subr.mxu0 0.0
    %622 = vmatpush1.xpose.msra.mxu0 0.0
    %623 = vmatprep.subr.mxu0 0.0
    %624 = vmatpush1.xpose.msra.mxu0 0.0
    %625 = vmatprep.subr.mxu0 0.0
    %626 = vmatpush1.xpose.msra.mxu0 0.0
    %627 = vmatprep.subr.mxu0 0.0
    %628 = vmatpush1.xpose.msra.mxu0 0.0
    %629 = vmatprep.subr.mxu0 0.0
    %630 = vmatpush1.xpose.msra.mxu0 0.0
    %631 = vmatprep.subr.mxu0 0.0
    %632 = vmatpush1.xpose.msra.mxu0 0.0
    %633 = vmatprep.mubr.f32.mxu0 0.0
    %634 = vmatmul.mubr.f32.gmra.mrb[0].mxu0 %v519
    %v635 = vpop.f32.mrb[0].mxu0
    %v636 = vadd.f32 %v516, %v635
    %v637 = vpop.f32.mrb[0].mxu0
    %638 = vdwg.mxu0
    %639 = vst [vmem:[#allocation3] sm:$0x1] %v636
    // Predicated region
    $region30: #{tpu_custom_call.1} parent=1 // pred_check
      _
    $region31: #{tpu_custom_call.1} parent=1 // pred_check_branch
      %641 = sbr.rel (0) target = $region33
    $region32: #{tpu_custom_call.1} parent=1 // pred_region
      %s643 = ssub.s32 16, 16
      %644 = vsyncadd [#allocation4], %s643
      %s646 = sshll.u32 [#allocation3], 4
      %s647 = int_to_ptr.vmem [resolvable:$true] %s646
      %649 = dma.vmem_to_hbm [thread:$0]  %s647, 16, %s7, [#allocation4]
    $region33: #{tpu_custom_call.1} parent=1 // pred_fallthru
      _
    // Predicated region
    $region34: #{tpu_custom_call.1} parent=1 // pred_check
      _
    $region35: #{tpu_custom_call.1} parent=1 // pred_check_branch
      %651 = sbr.rel (0) target = $region37
    $region36: #{tpu_custom_call.1} parent=1 // pred_region
      %652 = dma.done [#allocation4], 16
    $region37: #{tpu_custom_call.1} parent=1 // pred_fallthru
      _
    %653 = vsyncpa [#allocation4], 1

</llo_original>
